<compile_context>
chip_gen: v5e
topology: v5e:2x2
jax: 0.10.0
libtpu: 0.0.40
codegen_flags: <defaults>
</compile_context>

<pallas_src>
import numpy as np
import jax
import jax.numpy as jnp
from jax.experimental import pallas as pl
from jax.experimental.pallas import tpu as pltpu

K = 3  # kernel_size from the module


def convt1d_kernel(x_ref, w_ref, b_ref, o_ref):
    """x_ref: (L, TN) VMEM; w_ref: (K,) SMEM; b_ref: (1,) SMEM; o_ref: (L_out, TN) VMEM.

    Batch is on lanes, length on sublanes:
        out[t, :] = b + sum_k x[t - k, :] * w[k]
    """
    l, tn = x_ref.shape
    l_out = o_ref.shape[0]            # == l + K - 1

    x = x_ref[...]                    # (L, TN), fully lane-dense
    b = b_ref[0]                      # SMEM scalar -> vreg broadcast

    # Tap 0 (+ bias) covers output rows [0, L); tail rows [L, L_out) start at bias.
    o_ref[0:l, :] = x * w_ref[0] + b
    o_ref[l:l_out, :] = jnp.zeros((l_out - l, tn), jnp.float32) + b

    # Remaining taps land at small static sublane offsets k = 1..K-1.
    for k in range(1, K):
        o_ref[k:k + l, :] += x * w_ref[k]


def _pick_tn(n, l, l_out):
    """Lane (batch) tile size: multiple of 128, sized from a conservative VMEM budget."""
    if n < 256:
        return n                       # block last dim == full array dim -> legal
    budget = 8 * 1024 * 1024           # fits v5e/v6e/v7x scoped-VMEM defaults
    bytes_per_col = 4 * (l + l_out) * 2    # f32 in + out blocks, double-buffered
    tn = budget // bytes_per_col
    tn = min(tn, 4096, n // 2)         # cap; >= 2 grid steps so v7x megacore splits
    return max(128, (tn // 128) * 128)


def conv_transpose1d(x, weight, bias):
    """x: (N, 1, L) f32; weight: (1, 1, K) f32 (torch [C_in, C_out, K]); bias: (1,) f32.

    Returns (N, 1, L_out) with L_out = L + K - 1, matching nn.ConvTranspose1d(1, 1, 3).
    """
    n, c, l = x.shape
    assert c == 1
    l_out = l + K - 1

    # Batch-on-lanes layout: present the activations as (L, N). For channels == 1
    # this is a cheap 2-D transpose; if the surrounding graph keeps activations
    # length-major these transposes disappear entirely.
    xt = x.reshape(n, l).astype(jnp.float32).T           # (L, N)
    w_flat = weight.reshape(K).astype(jnp.float32)
    b_flat = bias.reshape(1).astype(jnp.float32)

    tn = _pick_tn(n, l, l_out)
    grid = (pl.cdiv(n, tn),)

    # TODO(synk): for very long L, additionally tile the length (sublane) axis with a
    # (K-1)-row halo per tile; unnecessary at this module's shapes.
    out = pl.pallas_call(
        convt1d_kernel,
        out_shape=jax.ShapeDtypeStruct((l_out, n), jnp.float32),
        grid=grid,
        in_specs=[
            pl.BlockSpec((l, tn), lambda i: (0, i)),            # input tile (VMEM)
            pl.BlockSpec(memory_space=pltpu.MemorySpace.SMEM),  # weight (K,)
            pl.BlockSpec(memory_space=pltpu.MemorySpace.SMEM),  # bias (1,)
        ],
        out_specs=pl.BlockSpec((l_out, tn), lambda i: (0, i)),
        compiler_params=pltpu.CompilerParams(
            dimension_semantics=("parallel",),
        ),
    )(xt, w_flat, b_flat)

    return out.T.reshape(n, 1, l_out)                     # back to NCL


def _reference(x, weight, bias):
    """Independent numpy reference for ConvTranspose1d(1, 1, 3), stride=1, pad=0."""
    x = np.asarray(x, np.float32)
    w = np.asarray(weight, np.float32)[0, 0]   # (K,)
    b = float(np.asarray(bias)[0])
    n, _, l = x.shape
    l_out = l + K - 1
    out = np.full((n, 1, l_out), b, np.float32)
    for bi in range(n):
        for s in range(l):
            for k in range(K):
                out[bi, 0, s + k] += x[bi, 0, s] * w[k]
    return out


if __name__ == "__main__":
    key = jax.random.PRNGKey(0)
    kx, kw, kb, kx2 = jax.random.split(key, 4)

    # Shapes consistent with the module: batch=2, in_channels=1, L=16.
    x = jax.random.normal(kx, (2, 1, 16), dtype=jnp.float32)
    # Torch shape conventions: weight [C_in, C_out, K], bias [C_out].
    weight = jax.random.normal(kw, (1, 1, K), dtype=jnp.float32) * 0.5
    bias = jax.random.normal(kb, (1,), dtype=jnp.float32) * 0.1

    out = conv_transpose1d(x, weight, bias)
    out = jax.block_until_ready(out)
    assert out.shape == (2, 1, 18), out.shape
    np.testing.assert_allclose(np.asarray(out), _reference(x, weight, bias),
                               rtol=1e-5, atol=1e-5)

    # Also exercise the lane-tiled / multi-step-grid path (batch on lanes, 2 steps).
    x_big = jax.random.normal(kx2, (512, 1, 16), dtype=jnp.float32)
    out_big = jax.block_until_ready(conv_transpose1d(x_big, weight, bias))
    assert out_big.shape == (512, 1, 18), out_big.shape
    np.testing.assert_allclose(np.asarray(out_big), _reference(x_big, weight, bias),
                               rtol=1e-5, atol=1e-5)

    print("KERNEL_OK")
</pallas_src>

<mosaic_0001>
module attributes {stable_mosaic.version = 11 : i64} {
  func.func @convt1d_kernel(%arg0: i32, %arg1: memref<16x2xf32, #tpu.memory_space<vmem>>, %arg2: memref<3xf32, #tpu.memory_space<smem>>, %arg3: memref<1xf32, #tpu.memory_space<smem>>, %arg4: memref<18x2xf32, #tpu.memory_space<vmem>>) attributes {dimension_semantics = [#tpu.dimension_semantics<parallel>], iteration_bounds = array<i64: 1>, scalar_prefetch = 0 : i64, scratch_operands = 0 : i64, tpu.core_type = #tpu.core_type<tc>, window_params = [{transform_indices = @transform_0, window_bounds = array<i64: 16, 2>}, {transform_indices = @transform_1, window_bounds = array<i64: 3>}, {transform_indices = @transform_2, window_bounds = array<i64: 1>}, {transform_indices = @transform_3, window_bounds = array<i64: 18, 2>}]} {
    %c0 = arith.constant 0 : index
    %c0_0 = arith.constant 0 : index
    %0 = vector.load %arg1[%c0, %c0_0] : memref<16x2xf32, #tpu.memory_space<vmem>>, vector<16x2xf32>
    %c0_1 = arith.constant 0 : index
    %1 = memref.load %arg3[%c0_1] : memref<1xf32, #tpu.memory_space<smem>>
    %c0_2 = arith.constant 0 : index
    %2 = memref.load %arg2[%c0_2] : memref<3xf32, #tpu.memory_space<smem>>
    %3 = vector.broadcast %2 : f32 to vector<16x2xf32>
    %4 = arith.mulf %0, %3 : vector<16x2xf32>
    %5 = vector.broadcast %1 : f32 to vector<16x2xf32>
    %6 = arith.addf %4, %5 : vector<16x2xf32>
    %c0_3 = arith.constant 0 : index
    %c0_4 = arith.constant 0 : index
    %7 = vector.load %arg4[%c0_3, %c0_4] : memref<18x2xf32, #tpu.memory_space<vmem>>, vector<16x2xf32>
    tpu.vector_store %arg4[%c0_3, %c0_4], %6 {strides = array<i32>} : memref<18x2xf32, #tpu.memory_space<vmem>>, vector<16x2xf32>,
    %cst = arith.constant 0.000000e+00 : f32
    %8 = vector.broadcast %cst : f32 to vector<2x2xf32>
    %9 = vector.broadcast %1 : f32 to vector<2x2xf32>
    %10 = arith.addf %8, %9 : vector<2x2xf32>
    %c16 = arith.constant 16 : index
    %c0_5 = arith.constant 0 : index
    %11 = vector.load %arg4[%c16, %c0_5] : memref<18x2xf32, #tpu.memory_space<vmem>>, vector<2x2xf32>
    tpu.vector_store %arg4[%c16, %c0_5], %10 {strides = array<i32>} : memref<18x2xf32, #tpu.memory_space<vmem>>, vector<2x2xf32>,
    %c1 = arith.constant 1 : index
    %c0_6 = arith.constant 0 : index
    %12 = vector.load %arg4[%c1, %c0_6] : memref<18x2xf32, #tpu.memory_space<vmem>>, vector<16x2xf32>
    %c1_7 = arith.constant 1 : index
    %13 = memref.load %arg2[%c1_7] : memref<3xf32, #tpu.memory_space<smem>>
    %14 = vector.broadcast %13 : f32 to vector<16x2xf32>
    %15 = arith.mulf %0, %14 : vector<16x2xf32>
    %16 = arith.addf %12, %15 : vector<16x2xf32>
    %c1_8 = arith.constant 1 : index
    %c0_9 = arith.constant 0 : index
    %17 = vector.load %arg4[%c1_8, %c0_9] : memref<18x2xf32, #tpu.memory_space<vmem>>, vector<16x2xf32>
    tpu.vector_store %arg4[%c1_8, %c0_9], %16 {strides = array<i32>} : memref<18x2xf32, #tpu.memory_space<vmem>>, vector<16x2xf32>,
    %c2 = arith.constant 2 : index
    %c0_10 = arith.constant 0 : index
    %18 = vector.load %arg4[%c2, %c0_10] : memref<18x2xf32, #tpu.memory_space<vmem>>, vector<16x2xf32>
    %c2_11 = arith.constant 2 : index
    %19 = memref.load %arg2[%c2_11] : memref<3xf32, #tpu.memory_space<smem>>
    %20 = vector.broadcast %19 : f32 to vector<16x2xf32>
    %21 = arith.mulf %0, %20 : vector<16x2xf32>
    %22 = arith.addf %18, %21 : vector<16x2xf32>
    %c2_12 = arith.constant 2 : index
    %c0_13 = arith.constant 0 : index
    %23 = vector.load %arg4[%c2_12, %c0_13] : memref<18x2xf32, #tpu.memory_space<vmem>>, vector<16x2xf32>
    tpu.vector_store %arg4[%c2_12, %c0_13], %22 {strides = array<i32>} : memref<18x2xf32, #tpu.memory_space<vmem>>, vector<16x2xf32>,
    return
  }
  func.func @transform_0(%arg0: i32) -> (i32, i32) {
    %c0_i32 = arith.constant 0 : i32
    %c0_i32_0 = arith.constant 0 : i32
    return %c0_i32, %arg0 : i32, i32
  }
  func.func @transform_1(%arg0: i32) -> i32 {
    %c0_i32 = arith.constant 0 : i32
    %c0_i32_0 = arith.constant 0 : i32
    return %c0_i32 : i32
  }
  func.func @transform_2(%arg0: i32) -> i32 {
    %c0_i32 = arith.constant 0 : i32
    %c0_i32_0 = arith.constant 0 : i32
    return %c0_i32 : i32
  }
  func.func @transform_3(%arg0: i32) -> (i32, i32) {
    %c0_i32 = arith.constant 0 : i32
    %c0_i32_0 = arith.constant 0 : i32
    return %c0_i32, %arg0 : i32, i32
  }
}

</mosaic_0001>

<llo_original>
// kernel: tpu_custom_call.1
$region0: #{tpu_custom_call.1}
  #allocation0 [shape = 'u32[]', space=smem, size = 0x4, offset = 0x4, fixed_abs, tag = 'smem constant byte address 0x4 - core index']
  #allocation1 [shape = 'u32[72,128]{1,0:T(1,128)}', space=vmem, size = 0x9000, scoped, tag = 'internal scratch']
  #allocation2 [shape = 'f32[1]{0:T(128)S(6)}', space=smem, size = 0x200, scoped, tag = 'scoped memory for tpu_custom_call.1']
  %s0 = inlined_call_operand.vmem [shape: f32[16,2], index: 0, kind: input, shape index: {}]
  %s1 = inlined_call_operand.vmem [shape: f32[3], index: 1, kind: input, shape index: {}]
  %s2 = inlined_call_operand.<no memory space> [shape: f32[1], index: 2, kind: input, shape index: {}]
  %s3 = inlined_call_operand.vmem [shape: f32[18,2], index: 3, kind: output, shape index: {}]
  %s4 = sld [smem:[#allocation0]]
  $region26: #{tpu_custom_call.1} parent=0
    _
  %s6 = ssub.s32 1, %s4
  %s7 = scalar_select 0, %s6, %s4
  %8 = sst [smem:[#allocation2]] %s2
  $region1: #{tpu_custom_call.1} parent=0
    #allocation3 [shape = 'u8[512]{0}', space=smem, size = 0x200, scoped, tag = 'input window, operand 1, single buffered']
    #allocation4 [shape = 's32[1]{0}', space=sflag, size = 0x4, scoped, tag = 'scoped memory for tpu_custom_call.1']
    %9 = vsyncpa [#allocation4], 0
    // Predicated region
    $region2: #{tpu_custom_call.1} parent=1 // pred_check
      _
    $region3: #{tpu_custom_call.1} parent=1 // pred_check_branch
      %11 = sbr.rel (0) target = $region5
    $region4: #{tpu_custom_call.1} parent=1 // pred_region
      _
    $region5: #{tpu_custom_call.1} parent=1 // pred_fallthru
      _
    // Predicated region
    $region6: #{tpu_custom_call.1} parent=1 // pred_check
      _
    $region7: #{tpu_custom_call.1} parent=1 // pred_check_branch
      %13 = sbr.rel (0) target = $region9
    $region8: #{tpu_custom_call.1} parent=1 // pred_region
      %15 = vsyncadd [#allocation4], 0
      %s17 = sshll.u32 %s1, 4
      %s18 = int_to_ptr.vmem [resolvable:$true] %s17
      %20 = dma.vmem_to_smem %s18, 16, [#allocation3], [#allocation4]
    $region9: #{tpu_custom_call.1} parent=1 // pred_fallthru
      _
    // Predicated region
    $region10: #{tpu_custom_call.1} parent=1 // pred_check
      _
    $region11: #{tpu_custom_call.1} parent=1 // pred_check_branch
      %22 = sbr.rel (0) target = $region13
    $region12: #{tpu_custom_call.1} parent=1 // pred_region
      _
    $region13: #{tpu_custom_call.1} parent=1 // pred_fallthru
      _
    // Predicated region
    $region14: #{tpu_custom_call.1} parent=1 // pred_check
      _
    $region15: #{tpu_custom_call.1} parent=1 // pred_check_branch
      %24 = sbr.rel (0) target = $region17
    $region16: #{tpu_custom_call.1} parent=1 // pred_region
      %26 = dma.done [#allocation4], 16
    $region17: #{tpu_custom_call.1} parent=1 // pred_fallthru
      _
    %27 = sfence
    %v28 = vld [vmem:[%s0] sm:$0xff]
    %v29 = vld [vmem:[%s0 + $0x8] sm:$0xff]
    %s30 = sld [smem:[#allocation2]]
    %s31 = sld [smem:[#allocation3]]
    %v32 = vstv %s31
    %v33 = vmul.f32 %v28, %v32
    %v34 = vmul.f32 %v29, %v32
    %v35 = vstv %s30
    %v36 = vadd.f32 %v33, %v35
    %v37 = vadd.f32 %v34, %v35
    %vm38 = vcmask 15360
    %39 = vst.msk [vmem:[%s3] sm:$0xff] %vm38, %v36
    %40 = vst.msk [vmem:[%s3 + $0x8] sm:$0xff] %vm38, %v37
    %v41 = vadd.f32 %v35, 0.0
    %vm42 = vcmask 9216
    %43 = vst.msk [vmem:[%s3 + $0x10] sm:$0x3] %vm42, %v41
    %v44 = vld [vmem:[%s3 + $0x1] sm:$0xff]
    %v45 = vld [vmem:[%s3 + $0x9] sm:$0xff]
    %s46 = sld [smem:[#allocation3 + $0x1]]
    %v47 = vstv %s46
    %v48 = vmul.f32 %v28, %v47
    %v49 = vmul.f32 %v29, %v47
    %v50 = vadd.f32 %v44, %v48
    %v51 = vadd.f32 %v45, %v49
    %52 = vst.msk [vmem:[%s3 + $0x1] sm:$0xff] %vm38, %v50
    %53 = vst.msk [vmem:[%s3 + $0x9] sm:$0xff] %vm38, %v51
    %v54 = vld [vmem:[%s3 + $0x2] sm:$0xff]
    %v55 = vld [vmem:[%s3 + $0xa] sm:$0xff]
    %s56 = sld [smem:[#allocation3 + $0x2]]
    %v57 = vstv %s56
    %v58 = vmul.f32 %v28, %v57
    %v59 = vmul.f32 %v29, %v57
    %v60 = vadd.f32 %v54, %v58
    %v61 = vadd.f32 %v55, %v59
    %62 = vst.msk [vmem:[%s3 + $0x2] sm:$0xff] %vm38, %v60
    %63 = vst.msk [vmem:[%s3 + $0xa] sm:$0xff] %vm38, %v61
    // Predicated region
    $region18: #{tpu_custom_call.1} parent=1 // pred_check
      _
    $region19: #{tpu_custom_call.1} parent=1 // pred_check_branch
      %65 = sbr.rel (0) target = $region21
    $region20: #{tpu_custom_call.1} parent=1 // pred_region
      _
    $region21: #{tpu_custom_call.1} parent=1 // pred_fallthru
      _
    // Predicated region
    $region22: #{tpu_custom_call.1} parent=1 // pred_check
      _
    $region23: #{tpu_custom_call.1} parent=1 // pred_check_branch
      %67 = sbr.rel (0) target = $region25
    $region24: #{tpu_custom_call.1} parent=1 // pred_region
      _
    $region25: #{tpu_custom_call.1} parent=1 // pred_fallthru
      _
    %68 = vsyncpa [#allocation4], 1

</llo_original>
